<compile_context>
chip_gen: v7x
topology: tpu7x:2x2x1
jax: 0.10.0
libtpu: 0.0.40
codegen_flags: <defaults>
</compile_context>

<pallas_src>
import functools
import math

import jax
import jax.numpy as jnp
from jax.experimental import pallas as pl
from jax.experimental.pallas import tpu as pltpu


def _round_up(x, m):
    return (x + m - 1) // m * m


def _gelu_tanh(x):
    # PyTorch "gelu_pytorch_tanh": 0.5*x*(1+tanh(sqrt(2/pi)*(x+0.044715*x^3)))
    c = math.sqrt(2.0 / math.pi)
    return 0.5 * x * (1.0 + jnp.tanh(c * (x + 0.044715 * x * x * x)))


def _siglip_mlp_kernel(x_ref, w1_ref, b1_ref, w2_ref, b2_ref, o_ref,
                       acc_ref=None, *, nf):
    # fc1 partial: (tm, H) @ (H, tf) + b1[tf]  -- bf16 MXU, fp32 accumulate.
    h = jnp.dot(x_ref[...], w1_ref[...], preferred_element_type=jnp.float32)
    h = h + b1_ref[...].astype(jnp.float32)
    g = _gelu_tanh(h)                       # fp32 tanh-GELU (EUP path, v5e-safe)
    # fc2 partial: (tm, tf) @ (tf, H), fp32 accumulate on the MXU.
    part = jnp.dot(g.astype(w2_ref.dtype), w2_ref[...],
                   preferred_element_type=jnp.float32)

    if nf == 1:
        # Weight-resident fast path: single F block, no accumulator round-trip.
        o_ref[...] = (part + b2_ref[...].astype(jnp.float32)).astype(o_ref.dtype)
    else:
        j = pl.program_id(1)

        @pl.when(j == 0)
        def _():
            acc_ref[...] = jnp.zeros_like(acc_ref)

        total = acc_ref[...] + part

        @pl.when(j < nf - 1)
        def _():
            acc_ref[...] = total

        @pl.when(j == nf - 1)
        def _():
            # Fuse the last partial, bias add and cast directly into o_ref.
            o_ref[...] = (total
                          + b2_ref[...].astype(jnp.float32)).astype(o_ref.dtype)


def prepare_siglip_mlp_weights(w1, b1, w2, b2, dtype=jnp.bfloat16):
    """One-time, at model-load time (NOT in the per-call jitted path).

    Takes PyTorch nn.Linear layout weights (out_features, in_features),
    transposes them to the x @ W layout, casts the matmul weights to `dtype`
    (bf16 by default, the MXU-native dtype) and zero-pads the intermediate
    dimension F to a multiple of 128 (lane alignment).  The padding is exact:
    gelu(0 + 0) == 0 and the padded W2 rows are zero, so padded F columns
    contribute nothing.  Biases stay fp32 (cheap, better accuracy).

    Returns (w1_t [H, Fp], b1_row [1, Fp] f32, w2_t [Fp, H], b2_row [1, H] f32).
    """
    F, H = w1.shape
    assert w2.shape == (H, F) and b1.shape == (F,) and b2.shape == (H,)
    Fp = F if F <= 128 else _round_up(F, 128)

    w1_t = jnp.zeros((H, Fp), dtype).at[:, :F].set(w1.T.astype(dtype))
    w2_t = jnp.zeros((Fp, H), dtype).at[:F, :].set(w2.T.astype(dtype))
    b1_r = jnp.zeros((1, Fp), jnp.float32).at[:, :F].set(
        b1.astype(jnp.float32)[None, :])
    b2_r = b2.astype(jnp.float32).reshape(1, H)
    return w1_t, b1_r, w2_t, b2_r


def _vmem_budget_bytes():
    cap = 64 << 20                      # conservative default = v7x per-TC VMEM
    try:
        cap = int(pltpu.get_tpu_info().vmem_capacity_bytes)
    except Exception:
        pass
    return int(0.75 * cap)              # leave headroom for compiler scratch


def _footprint_bytes(tm, tf, H, nf, x_bytes, w_bytes, b_bytes, out_bytes):
    # Double-buffered pipeline blocks (weights are DMA'd only once when their
    # block index never changes, but two buffers are still allocated).
    bufs = 2 * (tm * H * x_bytes                      # x tile
                + (H * tf + tf * H) * w_bytes         # W1^T / W2^T tiles
                + (tf + H) * b_bytes                  # bias tiles
                + tm * H * out_bytes)                 # out tile
    acc = 0 if nf == 1 else tm * H * 4                # fp32 accumulator
    interm = 2 * tm * tf * 4                          # fp32 h and g temporaries
    return bufs + acc + interm


def _select_tiles(M, H, Fp, tm_hint, max_tf, x_bytes, w_bytes, b_bytes,
                  out_bytes, budget):
    # Row tile: multiple of 16 (bf16 sublane pack), never larger than needed.
    tm = max(16, (min(tm_hint, _round_up(M, 16)) // 16) * 16)
    # Megacore: when there is plenty of row work, prefer >=2 row tiles so the
    # 'parallel' M axis can shard across both v7x TensorCores.
    if M > 256 and _round_up(M, tm) == tm:
        tm = max(16, _round_up((M + 1) // 2, 16))

    cands = [Fp] + [t for t in (2048, 1024, 512, 256, 128)
                    if t < Fp and Fp % t == 0]
    if max_tf is not None:
        capped = [t for t in cands if t <= max_tf]
        cands = capped if capped else [cands[-1]]

    headroom = 4 << 20
    while True:
        for tf in cands:
            nf = Fp // tf
            fp = _footprint_bytes(tm, tf, H, nf, x_bytes, w_bytes, b_bytes,
                                  out_bytes)
            if fp + headroom <= budget:
                return tm, tf
        if tm <= 16:
            return tm, cands[-1]        # smallest tiles; let the compiler try
        tm = max(16, ((tm // 2) // 16) * 16)


@functools.partial(jax.jit, static_argnames=("tm", "max_tf"))
def siglip_mlp(hidden_states, w1_t, b1_r, w2_t, b2_r, *, tm=512, max_tf=None):
    """hidden_states: [..., H]; weights prepared by prepare_siglip_mlp_weights."""
    orig_shape = hidden_states.shape
    H = orig_shape[-1]
    Fp = w1_t.shape[1]
    assert w1_t.shape == (H, Fp) and w2_t.shape == (Fp, H)

    M = 1
    for d in orig_shape[:-1]:
        M *= d

    x_dtype = w1_t.dtype                       # matmul input dtype (bf16)
    out_dtype = hidden_states.dtype
    x_bytes = jnp.dtype(x_dtype).itemsize
    w_bytes = jnp.dtype(w1_t.dtype).itemsize
    b_bytes = jnp.dtype(b1_r.dtype).itemsize
    out_bytes = jnp.dtype(out_dtype).itemsize

    budget = _vmem_budget_bytes()
    tm_eff, tf = _select_tiles(M, H, Fp, tm, max_tf, x_bytes, w_bytes, b_bytes,
                               out_bytes, budget)
    nf = Fp // tf
    Mp = _round_up(M, tm_eff)
    n_row = Mp // tm_eff

    x = hidden_states.reshape(M, H).astype(x_dtype)
    if Mp != M:
        x = jnp.pad(x, ((0, Mp - M), (0, 0)))

    # Advisory cost estimate: padded flops + real weight-streaming factor.
    w_stream = 1 if nf == 1 else n_row
    flops = 4 * Mp * H * Fp
    bytes_accessed = int(
        Mp * H * (x_bytes + out_bytes)
        + w_stream * (2 * H * Fp * w_bytes + (Fp + H) * b_bytes))
    cost = pl.CostEstimate(flops=flops, transcendentals=Mp * Fp,
                           bytes_accessed=bytes_accessed)

    kernel = functools.partial(_siglip_mlp_kernel, nf=nf)
    scratch = [] if nf == 1 else [pltpu.VMEM((tm_eff, H), jnp.float32)]

    out = pl.pallas_call(
        kernel,
        out_shape=jax.ShapeDtypeStruct((Mp, H), out_dtype),
        grid_spec=pltpu.PrefetchScalarGridSpec(
            num_scalar_prefetch=0,
            grid=(n_row, nf),
            in_specs=[
                pl.BlockSpec((tm_eff, H), lambda i, j: (i, 0)),   # x row tile
                pl.BlockSpec((H, tf), lambda i, j: (0, j)),       # W1^T tile
                pl.BlockSpec((1, tf), lambda i, j: (0, j)),       # b1 tile
                pl.BlockSpec((tf, H), lambda i, j: (j, 0)),       # W2^T tile
                pl.BlockSpec((1, H), lambda i, j: (0, 0)),        # b2 (resident)
            ],
            out_specs=pl.BlockSpec((tm_eff, H), lambda i, j: (i, 0)),
            scratch_shapes=scratch,
        ),
        compiler_params=pltpu.CompilerParams(
            dimension_semantics=("parallel", "arbitrary"),
            vmem_limit_bytes=budget),
        cost_estimate=cost,
    )(x, w1_t, b1_r, w2_t, b2_r)

    if Mp != M:
        out = out[:M]
    return out.reshape(orig_shape)


def _reference(hidden_states, w1, b1, w2, b2):
    h = hidden_states @ w1.T + b1
    return _gelu_tanh(h) @ w2.T + b2


if __name__ == "__main__":
    key = jax.random.PRNGKey(0)
    kx, k1, k2, k3, k4 = jax.random.split(key, 5)

    # Small SigLIP-like config: hidden_size=32, intermediate_size=64.
    B, S, H, F = 2, 8, 32, 64
    x = jax.random.normal(kx, (B, S, H), dtype=jnp.float32)
    # nn.Linear layout: weight is (out_features, in_features).
    w1 = jax.random.normal(k1, (F, H), dtype=jnp.float32) / math.sqrt(H)
    b1 = jax.random.normal(k2, (F,), dtype=jnp.float32) * 0.01
    w2 = jax.random.normal(k3, (H, F), dtype=jnp.float32) / math.sqrt(F)
    b2 = jax.random.normal(k4, (H,), dtype=jnp.float32) * 0.01

    w1_t, b1_r, w2_t, b2_r = prepare_siglip_mlp_weights(w1, b1, w2, b2)

    # Weight-resident path (single F block, no accumulator scratch).
    out = jax.block_until_ready(siglip_mlp(x, w1_t, b1_r, w2_t, b2_r))
    ref = _reference(x, w1, b1, w2, b2)
    assert out.shape == (B, S, H) and out.dtype == x.dtype
    # bf16 matmuls (fp32 accumulate) vs. the fp32 PyTorch reference.
    assert jnp.allclose(out, ref, atol=5e-2, rtol=5e-2), "resident path mismatch"

    # Also exercise the F-tiled accumulator path (nf > 1) at small scale.
    F2 = 256
    w1b = jax.random.normal(k1, (F2, H), dtype=jnp.float32) / math.sqrt(H)
    b1b = jax.random.normal(k2, (F2,), dtype=jnp.float32) * 0.01
    w2b = jax.random.normal(k3, (H, F2), dtype=jnp.float32) / math.sqrt(F2)
    b2b = jax.random.normal(k4, (H,), dtype=jnp.float32) * 0.01
    w1b_t, b1b_r, w2b_t, b2b_r = prepare_siglip_mlp_weights(w1b, b1b, w2b, b2b)
    out2 = jax.block_until_ready(
        siglip_mlp(x, w1b_t, b1b_r, w2b_t, b2b_r, max_tf=128))
    ref2 = _reference(x, w1b, b1b, w2b, b2b)
    assert jnp.allclose(out2, ref2, atol=5e-2, rtol=5e-2), "tiled path mismatch"

    print("KERNEL_OK")
</pallas_src>

<mosaic_0001>
module attributes {stable_mosaic.version = 11 : i64} {
  func.func @_siglip_mlp_kernel(%arg0: i32, %arg1: i32, %arg2: memref<16x32xbf16, #tpu.memory_space<vmem>>, %arg3: memref<32x64xbf16, #tpu.memory_space<vmem>>, %arg4: memref<1x64xf32, #tpu.memory_space<vmem>>, %arg5: memref<64x32xbf16, #tpu.memory_space<vmem>>, %arg6: memref<1x32xf32, #tpu.memory_space<vmem>>, %arg7: memref<16x32xf32, #tpu.memory_space<vmem>>) attributes {dimension_semantics = [#tpu.dimension_semantics<parallel>, #tpu.dimension_semantics<arbitrary>], iteration_bounds = array<i64: 1, 1>, scalar_prefetch = 0 : i64, scratch_operands = 0 : i64, tpu.core_type = #tpu.core_type<tc>, window_params = [{transform_indices = @transform_0, window_bounds = array<i64: 16, 32>}, {transform_indices = @transform_1, window_bounds = array<i64: 32, 64>}, {transform_indices = @transform_2, window_bounds = array<i64: 1, 64>}, {transform_indices = @transform_3, window_bounds = array<i64: 64, 32>}, {pipeline_mode = #tpu.pipeline_mode<synchronous>, transform_indices = @transform_4, window_bounds = array<i64: 1, 32>}, {transform_indices = @transform_5, window_bounds = array<i64: 16, 32>}]} {
    %c0 = arith.constant 0 : index
    %c0_0 = arith.constant 0 : index
    %0 = vector.load %arg2[%c0, %c0_0] : memref<16x32xbf16, #tpu.memory_space<vmem>>, vector<16x32xbf16>
    %c0_1 = arith.constant 0 : index
    %c0_2 = arith.constant 0 : index
    %1 = vector.load %arg3[%c0_1, %c0_2] : memref<32x64xbf16, #tpu.memory_space<vmem>>, vector<32x64xbf16>
    %cst = arith.constant dense<0.000000e+00> : vector<16x64xf32>
    %2 = tpu.matmul %0, %1, %cst {dimension_numbers = #tpu.dot_dimension_numbers<[1], [0], [0], [1], [0, 0, 1, 1], [], []>} : vector<16x32xbf16>, vector<32x64xbf16>, vector<16x64xf32> -> vector<16x64xf32>
    %c0_3 = arith.constant 0 : index
    %c0_4 = arith.constant 0 : index
    %3 = vector.load %arg4[%c0_3, %c0_4] : memref<1x64xf32, #tpu.memory_space<vmem>>, vector<1x64xf32>
    %4 = vector.broadcast %3 : vector<1x64xf32> to vector<16x64xf32>
    %5 = arith.addf %2, %4 : vector<16x64xf32>
    %cst_5 = arith.constant 5.000000e-01 : f32
    %6 = vector.broadcast %cst_5 : f32 to vector<16x64xf32>
    %7 = arith.mulf %6, %5 : vector<16x64xf32>
    %cst_6 = arith.constant 4.471500e-02 : f32
    %8 = vector.broadcast %cst_6 : f32 to vector<16x64xf32>
    %9 = arith.mulf %8, %5 : vector<16x64xf32>
    %10 = arith.mulf %9, %5 : vector<16x64xf32>
    %11 = arith.mulf %10, %5 : vector<16x64xf32>
    %12 = arith.addf %5, %11 : vector<16x64xf32>
    %cst_7 = arith.constant 0.797884583 : f32
    %13 = vector.broadcast %cst_7 : f32 to vector<16x64xf32>
    %14 = arith.mulf %13, %12 : vector<16x64xf32>
    %15 = math.tanh %14 : vector<16x64xf32>
    %cst_8 = arith.constant 1.000000e+00 : f32
    %16 = vector.broadcast %cst_8 : f32 to vector<16x64xf32>
    %17 = arith.addf %16, %15 : vector<16x64xf32>
    %18 = arith.mulf %7, %17 : vector<16x64xf32>
    %19 = arith.truncf %18 : vector<16x64xf32> to vector<16x64xbf16>
    %c0_9 = arith.constant 0 : index
    %c0_10 = arith.constant 0 : index
    %20 = vector.load %arg5[%c0_9, %c0_10] : memref<64x32xbf16, #tpu.memory_space<vmem>>, vector<64x32xbf16>
    %cst_11 = arith.constant dense<0.000000e+00> : vector<16x32xf32>
    %21 = tpu.matmul %19, %20, %cst_11 {dimension_numbers = #tpu.dot_dimension_numbers<[1], [0], [0], [1], [0, 0, 1, 1], [], []>} : vector<16x64xbf16>, vector<64x32xbf16>, vector<16x32xf32> -> vector<16x32xf32>
    %c0_12 = arith.constant 0 : index
    %c0_13 = arith.constant 0 : index
    %22 = vector.load %arg6[%c0_12, %c0_13] : memref<1x32xf32, #tpu.memory_space<vmem>>, vector<1x32xf32>
    %23 = vector.broadcast %22 : vector<1x32xf32> to vector<16x32xf32>
    %24 = arith.addf %21, %23 : vector<16x32xf32>
    %c0_14 = arith.constant 0 : index
    %c0_15 = arith.constant 0 : index
    %25 = vector.load %arg7[%c0_14, %c0_15] : memref<16x32xf32, #tpu.memory_space<vmem>>, vector<16x32xf32>
    tpu.vector_store %arg7[%c0_14, %c0_15], %24 {strides = array<i32>} : memref<16x32xf32, #tpu.memory_space<vmem>>, vector<16x32xf32>,
    return
  }
  func.func @transform_0(%arg0: i32, %arg1: i32) -> (i32, i32) {
    %c0_i32 = arith.constant 0 : i32
    %c0_i32_0 = arith.constant 0 : i32
    return %arg0, %c0_i32 : i32, i32
  }
  func.func @transform_1(%arg0: i32, %arg1: i32) -> (i32, i32) {
    %c0_i32 = arith.constant 0 : i32
    %c0_i32_0 = arith.constant 0 : i32
    return %c0_i32, %arg1 : i32, i32
  }
  func.func @transform_2(%arg0: i32, %arg1: i32) -> (i32, i32) {
    %c0_i32 = arith.constant 0 : i32
    %c0_i32_0 = arith.constant 0 : i32
    return %c0_i32, %arg1 : i32, i32
  }
  func.func @transform_3(%arg0: i32, %arg1: i32) -> (i32, i32) {
    %c0_i32 = arith.constant 0 : i32
    %c0_i32_0 = arith.constant 0 : i32
    return %arg1, %c0_i32 : i32, i32
  }
  func.func @transform_4(%arg0: i32, %arg1: i32) -> (i32, i32) {
    %c0_i32 = arith.constant 0 : i32
    %c0_i32_0 = arith.constant 0 : i32
    %c0_i32_1 = arith.constant 0 : i32
    return %c0_i32, %c0_i32_0 : i32, i32
  }
  func.func @transform_5(%arg0: i32, %arg1: i32) -> (i32, i32) {
    %c0_i32 = arith.constant 0 : i32
    %c0_i32_0 = arith.constant 0 : i32
    return %arg0, %c0_i32 : i32, i32
  }
}

</mosaic_0001>

<llo_original>
// kernel: siglip_mlp.1
$region0: #{siglip_mlp.1}
  #allocation0 [shape = 'u32[]', space=smem, size = 0x4, offset = 0x4, fixed_abs, tag = 'smem constant byte address 0x4 - core index']
  #allocation1 [shape = 'u32[144,128]{1,0:T(1,128)}', space=vmem, size = 0x12000, scoped, tag = 'internal scratch']
  %s0 = inlined_call_operand.vmem [shape: bf16[16,32], index: 0, kind: input, shape index: {}]
  %s1 = inlined_call_operand.vmem [shape: bf16[32,64], index: 1, kind: input, shape index: {}]
  %s2 = inlined_call_operand.vmem [shape: f32[1,64], index: 2, kind: input, shape index: {}]
  %s3 = inlined_call_operand.vmem [shape: bf16[64,32], index: 3, kind: input, shape index: {}]
  %s4 = inlined_call_operand.vmem [shape: f32[1,32], index: 4, kind: input, shape index: {}]
  %s5 = inlined_call_operand.hbm [shape: f32[16,32], index: 5, kind: output, shape index: {}]
  %s6 = sld [smem:[#allocation0]]
  $region30: #{siglip_mlp.1} parent=0
    _
  %s8 = ssub.s32 1, %s6
  %s9 = scalar_select 0, %s8, %s6
  $region1: #{siglip_mlp.1} parent=0
    #allocation2 [shape = 'u8[8192]{0}', space=vmem, size = 0x2000, scoped, tag = 'output window, operand 0, single buffered']
    #allocation3 [shape = 's32[1]{0}', space=sflag, size = 0x4, scoped, tag = 'scoped memory for siglip_mlp.1']
    %10 = vsyncpa [#allocation3], 0
    // Predicated region
    $region2: #{siglip_mlp.1} parent=1 // pred_check
      _
    $region3: #{siglip_mlp.1} parent=1 // pred_check_branch
      %12 = sbr.rel (0) target = $region5
    $region4: #{siglip_mlp.1} parent=1 // pred_region
      _
    $region5: #{siglip_mlp.1} parent=1 // pred_fallthru
      _
    // Predicated region
    $region6: #{siglip_mlp.1} parent=1 // pred_check
      _
    $region7: #{siglip_mlp.1} parent=1 // pred_check_branch
      %14 = sbr.rel (0) target = $region9
    $region8: #{siglip_mlp.1} parent=1 // pred_region
      _
    $region9: #{siglip_mlp.1} parent=1 // pred_fallthru
      _
    // Predicated region
    $region10: #{siglip_mlp.1} parent=1 // pred_check
      _
    $region11: #{siglip_mlp.1} parent=1 // pred_check_branch
      %16 = sbr.rel (0) target = $region13
    $region12: #{siglip_mlp.1} parent=1 // pred_region
      _
    $region13: #{siglip_mlp.1} parent=1 // pred_fallthru
      _
    // Predicated region
    $region14: #{siglip_mlp.1} parent=1 // pred_check
      _
    $region15: #{siglip_mlp.1} parent=1 // pred_check_branch
      %18 = sbr.rel (0) target = $region17
    $region16: #{siglip_mlp.1} parent=1 // pred_region
      _
    $region17: #{siglip_mlp.1} parent=1 // pred_fallthru
      _
    // Predicated region
    $region18: #{siglip_mlp.1} parent=1 // pred_check
      _
    $region19: #{siglip_mlp.1} parent=1 // pred_check_branch
      %20 = sbr.rel (0) target = $region21
    $region20: #{siglip_mlp.1} parent=1 // pred_region
      _
    $region21: #{siglip_mlp.1} parent=1 // pred_fallthru
      _
    %v22 = vld [vmem:[%s0] sm:$0xf]
    %v23 = vld [vmem:[%s0 + $0x4] sm:$0xf]
    %v24 = vld [vmem:[%s1] sm:$0xf]
    %v25 = vld [vmem:[%s1 + $0x4] sm:$0xf]
    %v26 = vld [vmem:[%s1 + $0x8] sm:$0xf]
    %v27 = vld [vmem:[%s1 + $0xc] sm:$0xf]
    %v28 = vld [vmem:[%s2] sm:$0x1]
    %v30 = vlaneseq
    %v31 = vshrl.u32 %v30, 7
    %v32 = vsub.s32 0, %v31
    %v33 = vrot.slane %v28, %v32
    %v37 = vunpack.c.l.b16 %v22
    %v38 = vunpack.c.l.b16 %v23
    %v39 = vpack.c.b16 %v38, %v37
    %v44 = vunpack.c.l.b16 %v24
    %v45 = vunpack.c.l.b16 %v25
    %v46 = vunpack.c.l.b16 %v26
    %v47 = vunpack.c.l.b16 %v27
    %v48 = vpack.c.b16 %v45, %v44
    %v49 = vpack.c.b16 %v47, %v46
    %vm52 = vcmask 261120
    %v54 = vsel %vm52, %v39, 0
    %56 = vmatprep.subr.bf16.mxu0 0
    %57 = vmatpush1.bf16.msra.mxu0 %v48
    %58 = vmatprep.subr.bf16.mxu0 0
    %59 = vmatpush1.bf16.msra.mxu0 %v49
    %60 = vmatprep.subr.bf16.mxu0 0
    %61 = vmatpush1.bf16.msra.mxu0 0
    %62 = vmatprep.subr.bf16.mxu0 0
    %63 = vmatpush1.bf16.msra.mxu0 0
    %64 = vmatprep.subr.bf16.mxu0 0
    %65 = vmatpush1.bf16.msra.mxu0 0
    %66 = vmatprep.subr.bf16.mxu0 0
    %67 = vmatpush1.bf16.msra.mxu0 0
    %68 = vmatprep.subr.bf16.mxu0 0
    %69 = vmatpush1.bf16.msra.mxu0 0
    %70 = vmatprep.subr.bf16.mxu0 0
    %71 = vmatpush1.bf16.msra.mxu0 0
    %72 = vmatprep.subr.bf16.mxu0 0
    %73 = vmatpush1.bf16.msra.mxu0 0
    %74 = vmatprep.subr.bf16.mxu0 0
    %75 = vmatpush1.bf16.msra.mxu0 0
    %76 = vmatprep.subr.bf16.mxu0 0
    %77 = vmatpush1.bf16.msra.mxu0 0
    %78 = vmatprep.subr.bf16.mxu0 0
    %79 = vmatpush1.bf16.msra.mxu0 0
    %80 = vmatprep.subr.bf16.mxu0 0
    %81 = vmatpush1.bf16.msra.mxu0 0
    %82 = vmatprep.subr.bf16.mxu0 0
    %83 = vmatpush1.bf16.msra.mxu0 0
    %84 = vmatprep.subr.bf16.mxu0 0
    %85 = vmatpush1.bf16.msra.mxu0 0
    %86 = vmatprep.subr.bf16.mxu0 0
    %87 = vmatpush1.bf16.msra.mxu0 0
    %88 = vmatprep.mubr.bf16.mxu0 0
    %89 = vmatmul.mubr.bf16.gmra.mrb[0].mxu0 %v54
    %v90 = vpop.f32.mrb[0].mxu0
    %v91 = vadd.f32 %v33, %v90
    %v92 = vpop.f32.mrb[0].mxu0
    %v93 = vpop.f32.mrb[0].mxu0
    %v94 = vadd.f32 %v33, %v93
    %v95 = vpop.f32.mrb[0].mxu0
    %96 = vdwg.mxu0
    %v97 = vmul.f32 %v91, 0.5
    %v98 = vmul.f32 %v94, 0.5
    %v99 = vmul.f32 %v91, 0.044715
    %v100 = vmul.f32 %v94, 0.044715
    %v101 = vmul.f32 %v99, %v91
    %v102 = vmul.f32 %v100, %v94
    %v103 = vmul.f32 %v101, %v91
    %v104 = vmul.f32 %v102, %v94
    %v105 = vadd.f32 %v91, %v103
    %v106 = vadd.f32 %v94, %v104
    %v107 = vmul.f32 %v105, 0.7978846
    %v108 = vmul.f32 %v106, 0.7978846
    %v109 = vtanh.pop %v107
    %v110 = vtanh.pop %v108
    %v111 = vadd.f32 %v109, 1.0
    %v112 = vadd.f32 %v110, 1.0
    %v113 = vmul.f32 %v97, %v111
    %v114 = vmul.f32 %v98, %v112
    %v115 = vpack.c.bf16 %v114, %v113
    %v116 = vld [vmem:[%s3] sm:$0xf]
    %v117 = vld [vmem:[%s3 + $0x4] sm:$0xf]
    %v118 = vld [vmem:[%s3 + $0x8] sm:$0xf]
    %v119 = vld [vmem:[%s3 + $0xc] sm:$0xf]
    %v120 = vld [vmem:[%s3 + $0x10] sm:$0xf]
    %v121 = vld [vmem:[%s3 + $0x14] sm:$0xf]
    %v122 = vld [vmem:[%s3 + $0x18] sm:$0xf]
    %v123 = vld [vmem:[%s3 + $0x1c] sm:$0xf]
    %v124 = vld [vmem:[%s4] sm:$0x1]
    %v126 = vlaneseq
    %v127 = vshrl.u32 %v126, 7
    %v128 = vsub.s32 0, %v127
    %v129 = vrot.slane %v124, %v128
    %v139 = vunpack.c.l.b16 %v116
    %v140 = vunpack.c.l.b16 %v117
    %v141 = vunpack.c.l.b16 %v118
    %v142 = vunpack.c.l.b16 %v119
    %v143 = vunpack.c.l.b16 %v120
    %v144 = vunpack.c.l.b16 %v121
    %v145 = vunpack.c.l.b16 %v122
    %v146 = vunpack.c.l.b16 %v123
    %v147 = vpack.c.b16 %v140, %v139
    %v148 = vpack.c.b16 %v142, %v141
    %v149 = vpack.c.b16 %v144, %v143
    %v150 = vpack.c.b16 %v146, %v145
    %vm155 = vcmask 523264
    %v157 = vsel %vm155, %v115, 0
    %159 = vmatprep.subr.bf16.mxu0 0
    %160 = vmatpush1.bf16.msra.mxu0 %v147
    %161 = vmatprep.subr.bf16.mxu0 0
    %162 = vmatpush1.bf16.msra.mxu0 %v148
    %163 = vmatprep.subr.bf16.mxu0 0
    %164 = vmatpush1.bf16.msra.mxu0 %v149
    %165 = vmatprep.subr.bf16.mxu0 0
    %166 = vmatpush1.bf16.msra.mxu0 %v150
    %167 = vmatprep.subr.bf16.mxu0 0
    %168 = vmatpush1.bf16.msra.mxu0 0
    %169 = vmatprep.subr.bf16.mxu0 0
    %170 = vmatpush1.bf16.msra.mxu0 0
    %171 = vmatprep.subr.bf16.mxu0 0
    %172 = vmatpush1.bf16.msra.mxu0 0
    %173 = vmatprep.subr.bf16.mxu0 0
    %174 = vmatpush1.bf16.msra.mxu0 0
    %175 = vmatprep.subr.bf16.mxu0 0
    %176 = vmatpush1.bf16.msra.mxu0 0
    %177 = vmatprep.subr.bf16.mxu0 0
    %178 = vmatpush1.bf16.msra.mxu0 0
    %179 = vmatprep.subr.bf16.mxu0 0
    %180 = vmatpush1.bf16.msra.mxu0 0
    %181 = vmatprep.subr.bf16.mxu0 0
    %182 = vmatpush1.bf16.msra.mxu0 0
    %183 = vmatprep.subr.bf16.mxu0 0
    %184 = vmatpush1.bf16.msra.mxu0 0
    %185 = vmatprep.subr.bf16.mxu0 0
    %186 = vmatpush1.bf16.msra.mxu0 0
    %187 = vmatprep.subr.bf16.mxu0 0
    %188 = vmatpush1.bf16.msra.mxu0 0
    %189 = vmatprep.subr.bf16.mxu0 0
    %190 = vmatpush1.bf16.msra.mxu0 0
    %191 = vmatprep.mubr.bf16.mxu0 0
    %192 = vmatmul.mubr.bf16.gmra.mrb[0].mxu0 %v157
    %v193 = vpop.f32.mrb[0].mxu0
    %v194 = vadd.f32 %v129, %v193
    %v195 = vpop.f32.mrb[0].mxu0
    %v196 = vpop.f32.mrb[0].mxu0
    %v197 = vadd.f32 %v129, %v196
    %v198 = vpop.f32.mrb[0].mxu0
    %199 = vdwg.mxu0
    %200 = vst.msk [vmem:[#allocation2] sm:$0xff] %vm52, %v194
    %201 = vst.msk [vmem:[#allocation2 + $0x8] sm:$0xff] %vm52, %v197
    // Predicated region
    $region22: #{siglip_mlp.1} parent=1 // pred_check
      _
    $region23: #{siglip_mlp.1} parent=1 // pred_check_branch
      %203 = sbr.rel (0) target = $region25
    $region24: #{siglip_mlp.1} parent=1 // pred_region
      %s205 = ssub.s32 256, 256
      %206 = vsyncadd [#allocation3], %s205
      %s207 = sshll.u32 [#allocation2], 4
      %s208 = int_to_ptr.vmem [resolvable:$true] %s207
      %213 = dma.vmem_to_hbm [thread:$0]  %s208, 256, %s5, [#allocation3], 128, 128, 8
    $region25: #{siglip_mlp.1} parent=1 // pred_fallthru
      _
    // Predicated region
    $region26: #{siglip_mlp.1} parent=1 // pred_check
      _
    $region27: #{siglip_mlp.1} parent=1 // pred_check_branch
      %215 = sbr.rel (0) target = $region29
    $region28: #{siglip_mlp.1} parent=1 // pred_region
      %216 = dma.done [#allocation3], 256
    $region29: #{siglip_mlp.1} parent=1 // pred_fallthru
      _
    %217 = vsyncpa [#allocation3], 1

</llo_original>
